<compile_context>
chip_gen: v7x
topology: tpu7x:2x2x1
jax: 0.10.0
libtpu: 0.0.40
codegen_flags: <defaults>
</compile_context>

<pallas_src>
import functools
import numpy as np
import jax
import jax.numpy as jnp
from jax.experimental import pallas as pl
from jax.experimental.pallas import tpu as pltpu

NUM_ATOM_TYPE = 119
NUM_CHIRALITY_TAG = 3
BN_EPS = 1e-5
LANE = 128
SUBLANE = 8


def _round_up(x, m):
    return (x + m - 1) // m * m


# ---------------------------------------------------------------------------
# Per-layer GCNConv (+ folded BN, + optional ReLU), row-tiled over A_hat.
# ---------------------------------------------------------------------------
def gcn_layer_kernel(a_ref, h_ref, w_ref, b_ref, o_ref, *, apply_relu):
    # a_ref: [tm, N_pad] bf16   row tile of normalized adjacency
    # h_ref: [N_pad, D_pad] bf16 full node features (resident)
    # w_ref: [D_pad, D_pad] bf16 folded layer weight
    # b_ref: [1, D_pad]    f32   folded layer bias
    agg = jnp.dot(a_ref[...], h_ref[...],
                  preferred_element_type=jnp.float32)          # (tm, D) f32 acc
    hw = jnp.dot(agg.astype(jnp.bfloat16), w_ref[...],
                 preferred_element_type=jnp.float32)           # (tm, D) f32 acc
    hb = hw + b_ref[...]                                       # f32 elementwise
    if apply_relu:
        hb = jnp.maximum(hb, 0.0)
    # eval-mode dropout is the identity
    o_ref[...] = hb.astype(o_ref.dtype)


def gcn_layer(a_hat, h, w, b, *, apply_relu, row_tile):
    n_pad = a_hat.shape[0]
    d_pad = h.shape[1]
    grid = (n_pad // row_tile,)
    flops = 2 * n_pad * n_pad * d_pad + 2 * n_pad * d_pad * d_pad
    bytes_accessed = (a_hat.size * 2 + h.size * 2 + w.size * 2
                      + b.size * 4 + n_pad * d_pad * 2)
    return pl.pallas_call(
        functools.partial(gcn_layer_kernel, apply_relu=apply_relu),
        out_shape=jax.ShapeDtypeStruct((n_pad, d_pad), jnp.bfloat16),
        grid_spec=pltpu.PrefetchScalarGridSpec(
            num_scalar_prefetch=0,
            grid=grid,
            in_specs=[
                pl.BlockSpec((row_tile, n_pad), lambda i: (i, 0)),  # A row tile
                pl.BlockSpec((n_pad, d_pad), lambda i: (0, 0)),     # full h
                pl.BlockSpec((d_pad, d_pad), lambda i: (0, 0)),     # W'
                pl.BlockSpec((1, d_pad), lambda i: (0, 0)),         # b'
            ],
            out_specs=pl.BlockSpec((row_tile, d_pad), lambda i: (i, 0)),
        ),
        compiler_params=pltpu.CompilerParams(
            dimension_semantics=("parallel",),          # shard tiles across TCs
            vmem_limit_bytes=32 * 1024 * 1024),         # v7x-safe budget
        cost_estimate=pl.CostEstimate(
            flops=flops, transcendentals=0, bytes_accessed=bytes_accessed),
    )(a_hat, h, w, b)


# ---------------------------------------------------------------------------
# Mean-pool + feat_lin head (tiny, single block).
# ---------------------------------------------------------------------------
def head_kernel(pool_ref, h_ref, wf_ref, bf_ref, o_ref):
    pooled = jnp.dot(pool_ref[...], h_ref[...],
                     preferred_element_type=jnp.float32)        # (B_pad, D_pad)
    out = jnp.dot(pooled.astype(jnp.bfloat16), wf_ref[...],
                  preferred_element_type=jnp.float32) + bf_ref[...]
    o_ref[...] = out


def gcn_head(pool_mat, h, wf, bf):
    b_pad = pool_mat.shape[0]
    f_pad = wf.shape[1]
    vspec = pl.BlockSpec(memory_space=pltpu.MemorySpace.VMEM)
    return pl.pallas_call(
        head_kernel,
        out_shape=jax.ShapeDtypeStruct((b_pad, f_pad), jnp.float32),
        in_specs=[vspec] * 4,
        out_specs=vspec,
        compiler_params=pltpu.CompilerParams(vmem_limit_bytes=32 * 1024 * 1024),
    )(pool_mat, h, wf, bf)


# ---------------------------------------------------------------------------
# Full forward wrapper: BN folding, padding, bf16 cast, layer loop, head.
# ---------------------------------------------------------------------------
def gcn_forward(h0, a_hat, w, b, gamma, beta, mean, var, pool_mat, wf, bf,
                *, row_tile=256):
    n, d = h0.shape
    num_layer = w.shape[0]
    num_graphs = pool_mat.shape[0]
    f_dim = wf.shape[1]

    # ---- fold eval-mode BatchNorm + conv bias into weights/bias ----
    s = gamma * jax.lax.rsqrt(var + BN_EPS)          # [L, 1, D]
    w_fold = w * s                                   # column-wise scale
    b_fold = (b - mean) * s + beta                   # [L, 1, D]

    # ---- pad to lane/sublane friendly shapes (after folding -> pads stay 0) --
    d_pad = _round_up(d, LANE)
    f_pad = _round_up(f_dim, LANE)
    row_tile = min(row_tile, _round_up(n, SUBLANE))
    n_pad = _round_up(n, row_tile)
    b_pad = _round_up(num_graphs, SUBLANE)

    def pad2(x, r, c):
        return jnp.pad(x, ((0, r - x.shape[0]), (0, c - x.shape[1])))

    h = pad2(h0, n_pad, d_pad).astype(jnp.bfloat16)
    a_p = pad2(a_hat, n_pad, n_pad).astype(jnp.bfloat16)
    w_p = jnp.pad(w_fold, ((0, 0), (0, d_pad - d), (0, d_pad - d))
                  ).astype(jnp.bfloat16)
    b_p = jnp.pad(b_fold, ((0, 0), (0, 0), (0, d_pad - d))).astype(jnp.float32)
    pool_p = pad2(pool_mat, b_pad, n_pad).astype(jnp.bfloat16)
    wf_p = pad2(wf, d_pad, f_pad).astype(jnp.bfloat16)
    bf_p = pad2(bf, 1, f_pad).astype(jnp.float32)

    for l in range(num_layer):
        h = gcn_layer(a_p, h, w_p[l], b_p[l],
                      apply_relu=(l < num_layer - 1), row_tile=row_tile)

    out_pad = gcn_head(pool_p, h, wf_p, bf_p)        # [B_pad, F_pad] f32
    return out_pad[:num_graphs, :f_dim]


# ---------------------------------------------------------------------------
# Pure-JAX reference (f32, unfolded, unpadded) and a small deterministic demo.
# ---------------------------------------------------------------------------
def xavier_uniform(key, shape):
    fan_in, fan_out = shape[-2], shape[-1]
    bound = float(np.sqrt(6.0 / (fan_in + fan_out)))
    return jax.random.uniform(key, shape, jnp.float32, -bound, bound)


def reference_forward(h0, a_hat, w, b, gamma, beta, mean, var, pool_mat, wf, bf):
    h = h0
    num_layer = w.shape[0]
    for l in range(num_layer):
        h = a_hat @ (h @ w[l]) + b[l]
        h = (h - mean[l]) / jnp.sqrt(var[l] + BN_EPS) * gamma[l] + beta[l]
        if l < num_layer - 1:
            h = jnp.maximum(h, 0.0)
    return pool_mat @ h @ wf + bf


if __name__ == "__main__":
    # Small, self-consistent shapes
    num_layer, emb_dim, feat_dim = 5, 32, 16
    N, B = 16, 2                                   # 16 nodes, 2 graphs (8 each)

    key = jax.random.PRNGKey(0)
    keys = jax.random.split(key, 10)

    # ---- synthetic graph data (data.x, data.edge_index, data.batch) ----
    atom_type = jax.random.randint(keys[0], (N,), 0, NUM_ATOM_TYPE)
    chirality = jax.random.randint(keys[1], (N,), 0, NUM_CHIRALITY_TAG)
    x_nodes = jnp.stack([atom_type, chirality], axis=1)          # [N, 2] int
    batch_vec = jnp.concatenate(
        [jnp.zeros(N // 2, jnp.int32), jnp.ones(N - N // 2, jnp.int32)])

    # ring edges within each graph (undirected -> both directions)
    src_list, dst_list = [], []
    for g in range(B):
        s, e = g * (N // B), (g + 1) * (N // B)
        for i in range(s, e):
            j = s + ((i - s + 1) % (e - s))
            src_list += [i, j]
            dst_list += [j, i]
    edge_index = jnp.array([src_list, dst_list], dtype=jnp.int32)  # [2, E]

    # ---- glue: embedding lookup, dense normalized adjacency, pooling matrix --
    emb1 = xavier_uniform(keys[2], (NUM_ATOM_TYPE, emb_dim))
    emb2 = xavier_uniform(keys[3], (NUM_CHIRALITY_TAG, emb_dim))
    h0 = emb1[x_nodes[:, 0]] + emb2[x_nodes[:, 1]]                 # [N, D]

    A = jnp.zeros((N, N), jnp.float32)
    A = A.at[edge_index[0], edge_index[1]].set(1.0)
    A = A + jnp.eye(N, dtype=jnp.float32)                          # self loops
    deg = A.sum(axis=1)
    dinv = 1.0 / jnp.sqrt(deg)
    a_hat = A * dinv[:, None] * dinv[None, :]                      # D^-1/2(A+I)D^-1/2

    pool_mat = (batch_vec[None, :] == jnp.arange(B)[:, None]).astype(jnp.float32)
    pool_mat = pool_mat / pool_mat.sum(axis=1, keepdims=True)      # mean pool

    # ---- deterministic parameters ----
    w = xavier_uniform(keys[4], (num_layer, emb_dim, emb_dim))     # x @ W layout
    b = 0.1 * jax.random.normal(keys[5], (num_layer, 1, emb_dim), jnp.float32)
    gamma = jnp.ones((num_layer, 1, emb_dim), jnp.float32)         # BN defaults
    beta = jnp.zeros((num_layer, 1, emb_dim), jnp.float32)
    mean = jnp.zeros((num_layer, 1, emb_dim), jnp.float32)
    var = jnp.ones((num_layer, 1, emb_dim), jnp.float32)
    wf = xavier_uniform(keys[6], (emb_dim, feat_dim))              # feat_lin
    bf = 0.1 * jax.random.normal(keys[7], (1, feat_dim), jnp.float32)

    # ---- run kernels (row_tile=8 -> a 2-step parallel grid even at demo size) --
    out = gcn_forward(h0, a_hat, w, b, gamma, beta, mean, var,
                      pool_mat, wf, bf, row_tile=8)
    out = jax.block_until_ready(out)

    ref = jax.block_until_ready(
        reference_forward(h0, a_hat, w, b, gamma, beta, mean, var,
                          pool_mat, wf, bf))
    # bf16 matmul operands with f32 accumulation -> relaxed tolerance
    np.testing.assert_allclose(np.asarray(out), np.asarray(ref),
                               rtol=5e-2, atol=5e-2)

    print("KERNEL_OK")
</pallas_src>

<mosaic_0001>
module attributes {stable_mosaic.version = 11 : i64} {
  func.func @gcn_layer_kernel(%arg0: i32, %arg1: memref<8x16xbf16, #tpu.memory_space<vmem>>, %arg2: memref<16x128xbf16, #tpu.memory_space<vmem>>, %arg3: memref<128x128xbf16, #tpu.memory_space<vmem>>, %arg4: memref<1x128xf32, #tpu.memory_space<vmem>>, %arg5: memref<8x128xbf16, #tpu.memory_space<vmem>>) attributes {dimension_semantics = [#tpu.dimension_semantics<parallel>], iteration_bounds = array<i64: 2>, scalar_prefetch = 0 : i64, scratch_operands = 0 : i64, tpu.core_type = #tpu.core_type<tc>, window_params = [{transform_indices = @transform_0, window_bounds = array<i64: 8, 16>}, {pipeline_mode = #tpu.pipeline_mode<synchronous>, transform_indices = @transform_1, window_bounds = array<i64: 16, 128>}, {pipeline_mode = #tpu.pipeline_mode<synchronous>, transform_indices = @transform_2, window_bounds = array<i64: 128, 128>}, {pipeline_mode = #tpu.pipeline_mode<synchronous>, transform_indices = @transform_3, window_bounds = array<i64: 1, 128>}, {transform_indices = @transform_4, window_bounds = array<i64: 8, 128>}]} {
    %c0 = arith.constant 0 : index
    %c0_0 = arith.constant 0 : index
    %0 = vector.load %arg1[%c0, %c0_0] : memref<8x16xbf16, #tpu.memory_space<vmem>>, vector<8x16xbf16>
    %c0_1 = arith.constant 0 : index
    %c0_2 = arith.constant 0 : index
    %1 = vector.load %arg2[%c0_1, %c0_2] : memref<16x128xbf16, #tpu.memory_space<vmem>>, vector<16x128xbf16>
    %cst = arith.constant dense<0.000000e+00> : vector<8x128xf32>
    %2 = tpu.matmul %0, %1, %cst {dimension_numbers = #tpu.dot_dimension_numbers<[1], [0], [0], [1], [0, 0, 1, 1], [], []>} : vector<8x16xbf16>, vector<16x128xbf16>, vector<8x128xf32> -> vector<8x128xf32>
    %3 = arith.truncf %2 : vector<8x128xf32> to vector<8x128xbf16>
    %c0_3 = arith.constant 0 : index
    %c0_4 = arith.constant 0 : index
    %4 = vector.load %arg3[%c0_3, %c0_4] : memref<128x128xbf16, #tpu.memory_space<vmem>>, vector<128x128xbf16>
    %cst_5 = arith.constant dense<0.000000e+00> : vector<8x128xf32>
    %5 = tpu.matmul %3, %4, %cst_5 {dimension_numbers = #tpu.dot_dimension_numbers<[1], [0], [0], [1], [0, 0, 1, 1], [], []>} : vector<8x128xbf16>, vector<128x128xbf16>, vector<8x128xf32> -> vector<8x128xf32>
    %c0_6 = arith.constant 0 : index
    %c0_7 = arith.constant 0 : index
    %6 = vector.load %arg4[%c0_6, %c0_7] : memref<1x128xf32, #tpu.memory_space<vmem>>, vector<1x128xf32>
    %7 = vector.broadcast %6 : vector<1x128xf32> to vector<8x128xf32>
    %8 = arith.addf %5, %7 : vector<8x128xf32>
    %cst_8 = arith.constant 0.000000e+00 : f32
    %9 = vector.broadcast %cst_8 : f32 to vector<8x128xf32>
    %10 = arith.maximumf %8, %9 : vector<8x128xf32>
    %11 = arith.truncf %10 : vector<8x128xf32> to vector<8x128xbf16>
    %c0_9 = arith.constant 0 : index
    %c0_10 = arith.constant 0 : index
    %12 = vector.load %arg5[%c0_9, %c0_10] : memref<8x128xbf16, #tpu.memory_space<vmem>>, vector<8x128xbf16>
    tpu.vector_store %arg5[%c0_9, %c0_10], %11 {strides = array<i32>} : memref<8x128xbf16, #tpu.memory_space<vmem>>, vector<8x128xbf16>,
    return
  }
  func.func @transform_0(%arg0: i32) -> (i32, i32) {
    %c0_i32 = arith.constant 0 : i32
    %c0_i32_0 = arith.constant 0 : i32
    return %arg0, %c0_i32 : i32, i32
  }
  func.func @transform_1(%arg0: i32) -> (i32, i32) {
    %c0_i32 = arith.constant 0 : i32
    %c0_i32_0 = arith.constant 0 : i32
    %c0_i32_1 = arith.constant 0 : i32
    return %c0_i32, %c0_i32_0 : i32, i32
  }
  func.func @transform_2(%arg0: i32) -> (i32, i32) {
    %c0_i32 = arith.constant 0 : i32
    %c0_i32_0 = arith.constant 0 : i32
    %c0_i32_1 = arith.constant 0 : i32
    return %c0_i32, %c0_i32_0 : i32, i32
  }
  func.func @transform_3(%arg0: i32) -> (i32, i32) {
    %c0_i32 = arith.constant 0 : i32
    %c0_i32_0 = arith.constant 0 : i32
    %c0_i32_1 = arith.constant 0 : i32
    return %c0_i32, %c0_i32_0 : i32, i32
  }
  func.func @transform_4(%arg0: i32) -> (i32, i32) {
    %c0_i32 = arith.constant 0 : i32
    %c0_i32_0 = arith.constant 0 : i32
    return %arg0, %c0_i32 : i32, i32
  }
}

</mosaic_0001>

<llo_original>
// kernel: tpu_custom_call.1
$region0: #{tpu_custom_call.1}
  #allocation0 [shape = 'u32[]', space=smem, size = 0x4, offset = 0x4, fixed_abs, tag = 'smem constant byte address 0x4 - core index']
  #allocation1 [shape = 'u32[144,128]{1,0:T(1,128)}', space=vmem, size = 0x12000, scoped, tag = 'internal scratch']
  %s0 = inlined_call_operand.hbm [shape: bf16[16,16], index: 0, kind: input, shape index: {}]
  %s1 = inlined_call_operand.hbm [shape: bf16[16,128], index: 1, kind: input, shape index: {}]
  %s2 = inlined_call_operand.hbm [shape: bf16[128,128], index: 2, kind: input, shape index: {}]
  %s3 = inlined_call_operand.vmem [shape: f32[1,128], index: 3, kind: input, shape index: {}]
  %s4 = inlined_call_operand.hbm [shape: bf16[16,128], index: 4, kind: output, shape index: {}]
  %s5 = sld [smem:[#allocation0]]
  $region61: #{tpu_custom_call.1} parent=0
    _
  %s7 = ssub.s32 1, %s5
  %s8 = scalar_select 0, %s7, %s5
  $region1: #{tpu_custom_call.1} parent=0
    #allocation2 [shape = 'u8[4096]{0}', space=vmem, size = 0x1000, scoped, tag = 'input window, operand 0']
    #allocation3 [shape = 's32[2]{0}', space=sflag, size = 0x8, scoped, tag = 'scoped memory for tpu_custom_call.1']
    #allocation4 [shape = 's32[2]{0}', space=sflag, size = 0x8, scoped, tag = 'scoped memory for tpu_custom_call.1']
    #allocation5 [shape = 'u8[4096]{0}', space=vmem, size = 0x1000, scoped, tag = 'input window, operand 1, single buffered']
    #allocation6 [shape = 's32[1]{0}', space=sflag, size = 0x4, scoped, tag = 'scoped memory for tpu_custom_call.1']
    #allocation7 [shape = 'u8[32768]{0}', space=vmem, size = 0x8000, scoped, tag = 'input window, operand 2, single buffered']
    #allocation8 [shape = 'u8[4096]{0}', space=vmem, size = 0x1000, scoped, tag = 'output window, operand 0']
    %9 = vsyncpa [#allocation3], 0
    %s10 = scalar_lea.sflag [#allocation3], 1
    %11 = vsyncpa %s10, 0
    %12 = vsyncpa [#allocation6], 0
    %13 = vsyncpa [#allocation4], 0
    %s14 = scalar_lea.sflag [#allocation4], 1
    %15 = vsyncpa %s14, 0
    loop: start=0, step=1, limit=4
    $region2: #{tpu_custom_call.1} parent=1 // loop_pre_header
      _
    $region3: #{tpu_custom_call.1} parent=1 // loop_header
      %s17 = sphi 0, %s21
      %p18 = scmp.ge.s32.totalorder %s17, 4
      %s27 = sphi 0, %s29
      %s30 = sphi 0, %s27
      %s31 = sphi 0, %s30
      %s47 = sphi 0, %s31
      %s51 = sphi 0, %s51
      %s53 = sphi 0, %s51
      %s54 = sphi 0, %s53
      %s68 = sphi 0, %s54
      %s72 = sphi 0, %s72
      %s74 = sphi 0, %s72
      %s75 = sphi 0, %s74
      %s89 = sphi 0, %s75
      %s93 = sphi 0, %s93
      %s95 = sphi 0, %s93
      %s96 = sphi 0, %s95
      %s110 = sphi 0, %s96
      %s116 = sphi 0, %s118
      %s119 = sphi 0, %s116
      %s120 = sphi 0, %s119
      %s136 = sphi 0, %s120
    $region4: #{tpu_custom_call.1} parent=1 // loop_header_branch
      %20 = sbr.rel (%p18) target = $region8
    $region5: #{tpu_custom_call.1} parent=1 // loop_body
      %s22 = ssub.s32 %s17, 1
      %s23 = ssub.s32 %s17, 2
      %s24 = sadd.s32 %s17, 1
      %s25 = ssub.s32 %s17, %s24
      %p26 = scmp.eq.s32.totalorder %s25, 0
      %s28 = sadd.s32 %s27, 1
      %s29 = scalar_select %p26, %s27, %s28
      %p32 = pneg %p26
      %p33 = scmp.eq.s32.totalorder %s17, 1
      %p34 = por %p32, %p33
      %p35 = scmp.ne.s32.totalorder %s27, %s30
      %p36 = scmp.eq.s32.totalorder %s17, 0
      %p37 = por %p35, %p36
      %p38 = scmp.ne.s32.totalorder %s27, %s30
      %p39 = scmp.eq.s32.totalorder %s22, 1
      %p40 = por %p38, %p39
      %p41 = scmp.ne.s32.totalorder %s30, %s31
      %p42 = scmp.eq.s32.totalorder %s22, 0
      %p43 = por %p41, %p42
      %p44 = scmp.ne.s32.totalorder %s30, %s31
      %p45 = scmp.eq.s32.totalorder %s23, 1
      %p46 = por %p44, %p45
      %p48 = scmp.ne.s32.totalorder %s31, %s47
      %p49 = scmp.eq.s32.totalorder %s23, 0
      %p50 = por %p48, %p49
      %s52 = sadd.s32 %s51, 1
      %p55 = scmp.eq.s32.totalorder %s17, 1
      %p56 = scmp.ne.s32.totalorder %s51, %s53
      %p57 = scmp.eq.s32.totalorder %s17, 0
      %p58 = por %p56, %p57
      %p59 = scmp.ne.s32.totalorder %s51, %s53
      %p60 = scmp.eq.s32.totalorder %s22, 1
      %p61 = por %p59, %p60
      %p62 = scmp.ne.s32.totalorder %s53, %s54
      %p63 = scmp.eq.s32.totalorder %s22, 0
      %p64 = por %p62, %p63
      %p65 = scmp.ne.s32.totalorder %s53, %s54
      %p66 = scmp.eq.s32.totalorder %s23, 1
      %p67 = por %p65, %p66
      %p69 = scmp.ne.s32.totalorder %s54, %s68
      %p70 = scmp.eq.s32.totalorder %s23, 0
      %p71 = por %p69, %p70
      %s73 = sadd.s32 %s72, 1
      %p76 = scmp.eq.s32.totalorder %s17, 1
      %p77 = scmp.ne.s32.totalorder %s72, %s74
      %p78 = scmp.eq.s32.totalorder %s17, 0
      %p79 = por %p77, %p78
      %p80 = scmp.ne.s32.totalorder %s72, %s74
      %p81 = scmp.eq.s32.totalorder %s22, 1
      %p82 = por %p80, %p81
      %p83 = scmp.ne.s32.totalorder %s74, %s75
      %p84 = scmp.eq.s32.totalorder %s22, 0
      %p85 = por %p83, %p84
      %p86 = scmp.ne.s32.totalorder %s74, %s75
      %p87 = scmp.eq.s32.totalorder %s23, 1
      %p88 = por %p86, %p87
      %p90 = scmp.ne.s32.totalorder %s75, %s89
      %p91 = scmp.eq.s32.totalorder %s23, 0
      %p92 = por %p90, %p91
      %s94 = sadd.s32 %s93, 1
      %p97 = scmp.eq.s32.totalorder %s17, 1
      %p98 = scmp.ne.s32.totalorder %s93, %s95
      %p99 = scmp.eq.s32.totalorder %s17, 0
      %p100 = por %p98, %p99
      %p101 = scmp.ne.s32.totalorder %s93, %s95
      %p102 = scmp.eq.s32.totalorder %s22, 1
      %p103 = por %p101, %p102
      %p104 = scmp.ne.s32.totalorder %s95, %s96
      %p105 = scmp.eq.s32.totalorder %s22, 0
      %p106 = por %p104, %p105
      %p107 = scmp.ne.s32.totalorder %s95, %s96
      %p108 = scmp.eq.s32.totalorder %s23, 1
      %p109 = por %p107, %p108
      %p111 = scmp.ne.s32.totalorder %s96, %s110
      %p112 = scmp.eq.s32.totalorder %s23, 0
      %p113 = por %p111, %p112
      %s114 = ssub.s32 %s17, %s24
      %p115 = scmp.eq.s32.totalorder %s114, 0
      %s117 = sadd.s32 %s116, 1
      %s118 = scalar_select %p115, %s116, %s117
      %p121 = pneg %p115
      %p122 = scmp.eq.s32.totalorder %s17, 1
      %p123 = por %p121, %p122
      %p124 = scmp.ne.s32.totalorder %s116, %s119
      %p125 = scmp.eq.s32.totalorder %s17, 0
      %p126 = por %p124, %p125
      %p127 = scmp.ne.s32.totalorder %s116, %s119
      %p128 = scmp.eq.s32.totalorder %s22, 1
      %p129 = por %p127, %p128
      %p130 = scmp.ne.s32.totalorder %s119, %s120
      %p131 = scmp.eq.s32.totalorder %s22, 0
      %p132 = por %p130, %p131
      %p133 = scmp.ne.s32.totalorder %s119, %s120
      %p134 = scmp.eq.s32.totalorder %s23, 1
      %p135 = por %p133, %p134
      %p137 = scmp.ne.s32.totalorder %s120, %s136
      %p138 = scmp.eq.s32.totalorder %s23, 0
      %p139 = por %p137, %p138
      %p140 = scmp.le.s32.totalorder 1, %s17
      %p141 = scmp.lt.s32.totalorder %s17, 3
      %p142 = pnand %p140, %p141
      %p143 = pneg %p142
      // Predicated region
      $region9: #{tpu_custom_call.1} parent=5 // pred_check
        _
      $region10: #{tpu_custom_call.1} parent=5 // pred_check_branch
        %145 = sbr.rel (%p142) target = $region12
      $region11: #{tpu_custom_call.1} parent=5 // pred_region
        %s146 = ssub.s32 %s17, 1
        // Predicated region
        $region13: #{tpu_custom_call.1} parent=11 // pred_check
          %p147 = pneg %p64
        $region14: #{tpu_custom_call.1} parent=11 // pred_check_branch
          %149 = sbr.rel (%p147) target = $region16
        $region15: #{tpu_custom_call.1} parent=11 // pred_region
          %s151 = ssub.s32 128, 128
          %152 = vsyncadd [#allocation6], %s151
          %s153 = sshll.u32 [#allocation5], 4
          %s154 = int_to_ptr.vmem [resolvable:$true] %s153
          %159 = dma.hbm_to_vmem [thread:$0]  %s1, 128, %s154, [#allocation6], 64, 64, 4
        $region16: #{tpu_custom_call.1} parent=11 // pred_fallthru
          _
        // Predicated region
        $region17: #{tpu_custom_call.1} parent=11 // pred_check
          %p160 = pneg %p85
        $region18: #{tpu_custom_call.1} parent=11 // pred_check_branch
          %162 = sbr.rel (%p160) target = $region20
        $region19: #{tpu_custom_call.1} parent=11 // pred_region
          %s164 = ssub.s32 1024, 1024
          %165 = vsyncadd [#allocation6], %s164
          %s166 = sshll.u32 [#allocation7], 4
          %s167 = int_to_ptr.vmem [resolvable:$true] %s166
          %172 = dma.hbm_to_vmem [thread:$0]  %s2, 1024, %s167, [#allocation6], 64, 64, 4
        $region20: #{tpu_custom_call.1} parent=11 // pred_fallthru
          _
        // Predicated region
        $region21: #{tpu_custom_call.1} parent=11 // pred_check
          %p173 = pneg %p106
        $region22: #{tpu_custom_call.1} parent=11 // pred_check_branch
          %175 = sbr.rel (%p173) target = $region24
        $region23: #{tpu_custom_call.1} parent=11 // pred_region
          _
        $region24: #{tpu_custom_call.1} parent=11 // pred_fallthru
          _
      $region12: #{tpu_custom_call.1} parent=5 // pred_fallthru
        _
      %p176 = scmp.lt.s32.totalorder %s17, 2
      // Predicated region
      $region25: #{tpu_custom_call.1} parent=5 // pred_check
        %p177 = pneg %p176
      $region26: #{tpu_custom_call.1} parent=5 // pred_check_branch
        %179 = sbr.rel (%p177) target = $region28
      $region27: #{tpu_custom_call.1} parent=5 // pred_region
        // Predicated region
        $region29: #{tpu_custom_call.1} parent=27 // pred_check
          %p180 = pneg %p37
        $region30: #{tpu_custom_call.1} parent=27 // pred_check_branch
          %182 = sbr.rel (%p180) target = $region32
        $region31: #{tpu_custom_call.1} parent=27 // pred_region
          %s183 = sand.u32 %s27, 1
          %s184 = scalar_lea.sflag [#allocation3], %s183
          %s185 = sand.u32 %s27, 1
          %s186 = smul.addr %s185, 4
          %s187 = scalar_lea.vmem [#allocation2], %s186
          %s189 = ssub.s32 64, 64
          %190 = vsyncadd %s184, %s189
          %s191 = smul.addr %s17, 64
          %s192 = scalar_lea.hbm %s0, %s191
          %s194 = sshll.u32 %s187, 4
          %s195 = int_to_ptr.vmem [resolvable:$true] %s194
          %197 = dma.hbm_to_vmem [thread:$0]  %s192, 64, %s195, %s184
        $region32: #{tpu_custom_call.1} parent=27 // pred_fallthru
          _
      $region28: #{tpu_custom_call.1} parent=5 // pred_fallthru
        _
      %p198 = scmp.le.s32.totalorder 1, %s17
      %p199 = scmp.lt.s32.totalorder %s17, 3
      %p200 = pnand %p198, %p199
      %p201 = pneg %p200
      // Predicated region
      $region33: #{tpu_custom_call.1} parent=5 // pred_check
        _
      $region34: #{tpu_custom_call.1} parent=5 // pred_check_branch
        %203 = sbr.rel (%p200) target = $region36
      $region35: #{tpu_custom_call.1} parent=5 // pred_region
        %s204 = ssub.s32 %s17, 1
        %s205 = sand.u32 %s30, 1
        %s206 = scalar_lea.sflag [#allocation3], %s205
        %s207 = sand.u32 %s30, 1
        %s208 = smul.addr %s207, 4
        %s209 = scalar_lea.vmem [#allocation2], %s208
        // Predicated region
        $region37: #{tpu_custom_call.1} parent=35 // pred_check
          %p210 = pneg %p43
        $region38: #{tpu_custom_call.1} parent=35 // pred_check_branch
          %212 = sbr.rel (%p210) target = $region40
        $region39: #{tpu_custom_call.1} parent=35 // pred_region
          %213 = dma.done %s206, 64
        $region40: #{tpu_custom_call.1} parent=35 // pred_fallthru
          _
        // Predicated region
        $region41: #{tpu_custom_call.1} parent=35 // pred_check
          %p214 = pneg %p64
        $region42: #{tpu_custom_call.1} parent=35 // pred_check_branch
          %216 = sbr.rel (%p214) target = $region44
        $region43: #{tpu_custom_call.1} parent=35 // pred_region
          %217 = dma.done [#allocation6], 128
        $region44: #{tpu_custom_call.1} parent=35 // pred_fallthru
          _
        // Predicated region
        $region45: #{tpu_custom_call.1} parent=35 // pred_check
          %p218 = pneg %p85
        $region46: #{tpu_custom_call.1} parent=35 // pred_check_branch
          %220 = sbr.rel (%p218) target = $region48
        $region47: #{tpu_custom_call.1} parent=35 // pred_region
          %221 = dma.done [#allocation6], 1024
        $region48: #{tpu_custom_call.1} parent=35 // pred_fallthru
          _
        %s222 = sand.u32 %s30, 1
        %s223 = scalar_lea.sflag [#allocation3], %s222
        %s224 = sand.u32 %s30, 1
        %s225 = smul.addr %s224, 4
        %s226 = scalar_lea.vmem [#allocation2], %s225
        %p227 = pneg %p43
        %p228 = pneg %p40
        %p229 = pneg %p64
        %p230 = pneg %p61
        %p231 = pneg %p85
        %p232 = pneg %p82
        %p233 = pneg %p106
        %p234 = pneg %p103
        %p235 = pneg %p132
        %p236 = pneg %p129
        %s237 = sand.u32 %s119, 1
        %s238 = scalar_lea.sflag [#allocation4], %s237
        %s239 = sand.u32 %s119, 1
        %s240 = smul.addr %s239, 4
        %s241 = scalar_lea.vmem [#allocation8], %s240
        %v243 = vld [vmem:[%s209] sm:$0xf]
        %v244 = vld [vmem:[#allocation5] sm:$0xf]
        %v245 = vld [vmem:[#allocation5 + $0x4] sm:$0xf]
        %v248 = vunpack.c.l.b16 %v244
        %v249 = vunpack.c.l.b16 %v245
        %v250 = vpack.c.b16 %v249, %v248
        %vm252 = vcmask 130048
        %v254 = vsel %vm252, %v243, 0
        %256 = vmatprep.subr.bf16.mxu0 0
        %257 = vmatpush1.bf16.msra.mxu0 %v250
        %258 = vmatprep.subr.bf16.mxu0 0
        %259 = vmatpush1.bf16.msra.mxu0 0
        %260 = vmatprep.subr.bf16.mxu0 0
        %261 = vmatpush1.bf16.msra.mxu0 0
        %262 = vmatprep.subr.bf16.mxu0 0
        %263 = vmatpush1.bf16.msra.mxu0 0
        %264 = vmatprep.subr.bf16.mxu0 0
        %265 = vmatpush1.bf16.msra.mxu0 0
        %266 = vmatprep.subr.bf16.mxu0 0
        %267 = vmatpush1.bf16.msra.mxu0 0
        %268 = vmatprep.subr.bf16.mxu0 0
        %269 = vmatpush1.bf16.msra.mxu0 0
        %270 = vmatprep.subr.bf16.mxu0 0
        %271 = vmatpush1.bf16.msra.mxu0 0
        %272 = vmatprep.subr.bf16.mxu0 0
        %273 = vmatpush1.bf16.msra.mxu0 0
        %274 = vmatprep.subr.bf16.mxu0 0
        %275 = vmatpush1.bf16.msra.mxu0 0
        %276 = vmatprep.subr.bf16.mxu0 0
        %277 = vmatpush1.bf16.msra.mxu0 0
        %278 = vmatprep.subr.bf16.mxu0 0
        %279 = vmatpush1.bf16.msra.mxu0 0
        %280 = vmatprep.subr.bf16.mxu0 0
        %281 = vmatpush1.bf16.msra.mxu0 0
        %282 = vmatprep.subr.bf16.mxu0 0
        %283 = vmatpush1.bf16.msra.mxu0 0
        %284 = vmatprep.subr.bf16.mxu0 0
        %285 = vmatpush1.bf16.msra.mxu0 0
        %286 = vmatprep.subr.bf16.mxu0 0
        %287 = vmatpush1.bf16.msra.mxu0 0
        %288 = vmatprep.mubr.bf16.mxu0 0
        %289 = vmatmul.mubr.bf16.gmra.mrb[0].mxu0 %v254
        %v290 = vpop.f32.mrb[0].mxu0
        %v291 = vadd.f32 0.0, %v290
        %v292 = vpop.f32.mrb[0].mxu0
        %v293 = vpop.f32.mrb[0].mxu0
        %v294 = vpop.f32.mrb[0].mxu0
        %295 = vdwg.mxu0
        %v296 = vpack.c.bf16 %v291, %v291
        %v297 = vld [vmem:[#allocation7] sm:$0xf]
        %v298 = vld [vmem:[#allocation7 + $0x4] sm:$0xf]
        %v299 = vld [vmem:[#allocation7 + $0x8] sm:$0xf]
        %v300 = vld [vmem:[#allocation7 + $0xc] sm:$0xf]
        %v301 = vld [vmem:[#allocation7 + $0x10] sm:$0xf]
        %v302 = vld [vmem:[#allocation7 + $0x14] sm:$0xf]
        %v303 = vld [vmem:[#allocation7 + $0x18] sm:$0xf]
        %v304 = vld [vmem:[#allocation7 + $0x1c] sm:$0xf]
        %v305 = vld [vmem:[#allocation7 + $0x20] sm:$0xf]
        %v306 = vld [vmem:[#allocation7 + $0x24] sm:$0xf]
        %v307 = vld [vmem:[#allocation7 + $0x28] sm:$0xf]
        %v308 = vld [vmem:[#allocation7 + $0x2c] sm:$0xf]
        %v309 = vld [vmem:[#allocation7 + $0x30] sm:$0xf]
        %v310 = vld [vmem:[#allocation7 + $0x34] sm:$0xf]
        %v311 = vld [vmem:[#allocation7 + $0x38] sm:$0xf]
        %v312 = vld [vmem:[#allocation7 + $0x3c] sm:$0xf]
        %v313 = vld [vmem:[%s3] sm:$0x1]
        %v315 = vlaneseq
        %v316 = vshrl.u32 %v315, 7
        %v317 = vsub.s32 0, %v316
        %v318 = vrot.slane %v313, %v317
        %v336 = vunpack.c.l.b16 %v297
        %v337 = vunpack.c.l.b16 %v298
        %v338 = vunpack.c.l.b16 %v299
        %v339 = vunpack.c.l.b16 %v300
        %v340 = vunpack.c.l.b16 %v301
        %v341 = vunpack.c.l.b16 %v302
        %v342 = vunpack.c.l.b16 %v303
        %v343 = vunpack.c.l.b16 %v304
        %v344 = vunpack.c.l.b16 %v305
        %v345 = vunpack.c.l.b16 %v306
        %v346 = vunpack.c.l.b16 %v307
        %v347 = vunpack.c.l.b16 %v308
        %v348 = vunpack.c.l.b16 %v309
        %v349 = vunpack.c.l.b16 %v310
        %v350 = vunpack.c.l.b16 %v311
        %v351 = vunpack.c.l.b16 %v312
        %v352 = vpack.c.b16 %v337, %v336
        %v353 = vpack.c.b16 %v339, %v338
        %v354 = vpack.c.b16 %v341, %v340
        %v355 = vpack.c.b16 %v343, %v342
        %v356 = vpack.c.b16 %v345, %v344
        %v357 = vpack.c.b16 %v347, %v346
        %v358 = vpack.c.b16 %v349, %v348
        %v359 = vpack.c.b16 %v351, %v350
        %368 = vmatprep.subr.bf16.mxu0 0
        %369 = vmatpush1.bf16.msra.mxu0 %v352
        %370 = vmatprep.subr.bf16.mxu0 0
        %371 = vmatpush1.bf16.msra.mxu0 %v353
        %372 = vmatprep.subr.bf16.mxu0 0
        %373 = vmatpush1.bf16.msra.mxu0 %v354
        %374 = vmatprep.subr.bf16.mxu0 0
        %375 = vmatpush1.bf16.msra.mxu0 %v355
        %376 = vmatprep.subr.bf16.mxu0 0
        %377 = vmatpush1.bf16.msra.mxu0 %v356
        %378 = vmatprep.subr.bf16.mxu0 0
        %379 = vmatpush1.bf16.msra.mxu0 %v357
        %380 = vmatprep.subr.bf16.mxu0 0
        %381 = vmatpush1.bf16.msra.mxu0 %v358
        %382 = vmatprep.subr.bf16.mxu0 0
        %383 = vmatpush1.bf16.msra.mxu0 %v359
        %384 = vmatprep.subr.bf16.mxu0 0
        %385 = vmatpush1.bf16.msra.mxu0 0
        %386 = vmatprep.subr.bf16.mxu0 0
        %387 = vmatpush1.bf16.msra.mxu0 0
        %388 = vmatprep.subr.bf16.mxu0 0
        %389 = vmatpush1.bf16.msra.mxu0 0
        %390 = vmatprep.subr.bf16.mxu0 0
        %391 = vmatpush1.bf16.msra.mxu0 0
        %392 = vmatprep.subr.bf16.mxu0 0
        %393 = vmatpush1.bf16.msra.mxu0 0
        %394 = vmatprep.subr.bf16.mxu0 0
        %395 = vmatpush1.bf16.msra.mxu0 0
        %396 = vmatprep.subr.bf16.mxu0 0
        %397 = vmatpush1.bf16.msra.mxu0 0
        %398 = vmatprep.subr.bf16.mxu0 0
        %399 = vmatpush1.bf16.msra.mxu0 0
        %400 = vmatprep.mubr.bf16.mxu0 0
        %401 = vmatmul.mubr.bf16.gmra.mrb[0].mxu0 %v296
        %v402 = vpop.f32.mrb[0].mxu0
        %v403 = vadd.f32 %v318, %v402
        %v404 = vpop.f32.mrb[0].mxu0
        %v405 = vpop.f32.mrb[0].mxu0
        %v406 = vpop.f32.mrb[0].mxu0
        %407 = vdwg.mxu0
        %v408 = vmax.f32 %v403, 0.0
        %v409 = vpack.c.bf16 %v408, %v408
        %410 = vst [vmem:[%s241] sm:$0xf] %v409
        %s411 = sand.u32 %s119, 1
        %s412 = scalar_lea.sflag [#allocation4], %s411
        %s413 = sand.u32 %s119, 1
        %s414 = smul.addr %s413, 4
        %s415 = scalar_lea.vmem [#allocation8], %s414
        // Predicated region
        $region49: #{tpu_custom_call.1} parent=35 // pred_check
          %p416 = pneg %p129
        $region50: #{tpu_custom_call.1} parent=35 // pred_check_branch
          %418 = sbr.rel (%p416) target = $region52
        $region51: #{tpu_custom_call.1} parent=35 // pred_region
          %s420 = ssub.s32 64, 64
          %421 = vsyncadd %s412, %s420
          %s422 = smul.addr %s22, 64
          %s423 = scalar_lea.hbm %s4, %s422
          %s425 = sshll.u32 %s415, 4
          %s426 = int_to_ptr.vmem [resolvable:$true] %s425
          %428 = dma.vmem_to_hbm [thread:$0]  %s426, 64, %s423, %s412
        $region52: #{tpu_custom_call.1} parent=35 // pred_fallthru
          _
      $region36: #{tpu_custom_call.1} parent=5 // pred_fallthru
        _
      %p429 = scmp.le.s32.totalorder 2, %s17
      // Predicated region
      $region53: #{tpu_custom_call.1} parent=5 // pred_check
        %p430 = pneg %p429
      $region54: #{tpu_custom_call.1} parent=5 // pred_check_branch
        %432 = sbr.rel (%p430) target = $region56
      $region55: #{tpu_custom_call.1} parent=5 // pred_region
        %s433 = ssub.s32 %s17, 2
        // Predicated region
        $region57: #{tpu_custom_call.1} parent=55 // pred_check
          %p434 = pneg %p135
        $region58: #{tpu_custom_call.1} parent=55 // pred_check_branch
          %436 = sbr.rel (%p434) target = $region60
        $region59: #{tpu_custom_call.1} parent=55 // pred_region
          %s437 = sand.u32 %s120, 1
          %s438 = scalar_lea.sflag [#allocation4], %s437
          %s439 = sand.u32 %s120, 1
          %s440 = smul.addr %s439, 4
          %s441 = scalar_lea.vmem [#allocation8], %s440
          %442 = dma.done %s438, 64
        $region60: #{tpu_custom_call.1} parent=55 // pred_fallthru
          _
      $region56: #{tpu_custom_call.1} parent=5 // pred_fallthru
        _
    $region6: #{tpu_custom_call.1} parent=1 // loop_footer
      %s21 = sadd.s32 1, %s17
    $region7: #{tpu_custom_call.1} parent=1 // loop_footer_branch
      %16 = sbr.rel target = $region3
    $region8: #{tpu_custom_call.1} parent=1 // loop_exit
      _
    %443 = vsyncpa [#allocation3], 1
    %s444 = scalar_lea.sflag [#allocation3], 1
    %445 = vsyncpa %s444, 1
    %446 = vsyncpa [#allocation6], 1
    %447 = vsyncpa [#allocation4], 1
    %s448 = scalar_lea.sflag [#allocation4], 1
    %449 = vsyncpa %s448, 1

</llo_original>
